<compile_context>
chip_gen: v6e
topology: v6e:2x2x1
jax: 0.10.0
libtpu: 0.0.40
codegen_flags: <defaults>
</compile_context>

<pallas_src>
import jax
import jax.numpy as jnp
from jax.experimental import pallas as pl
from jax.experimental.pallas import tpu as pltpu

LANES = 128      # vreg lane width (last dim)
SUBLANES = 8     # vreg sublane count
TR_MAX = 8192    # max rows per tile: 8192*128*4B = 4 MiB per f32 input buffer
CHUNK_MAX = 64   # rows per in-kernel accumulation chunk (8 vregs of f32)


def _num_tensorcores() -> int:
    """Best-effort TensorCore count (2 on v7x, 1 on v5e/v6e); safe fallback 1."""
    try:
        info = pltpu.get_tpu_info()
    except Exception:
        return 1
    for attr in ("num_cores", "core_count", "num_tensorcores", "tensorcore_count"):
        v = getattr(info, attr, None)
        if v is None:
            continue
        try:
            v = int(v)
        except (TypeError, ValueError):
            continue
        if v >= 1:
            return max(1, min(2, v))
    return 1


def _make_kernel(tr, chunk, bpc, valid_rows):
    """Builds the per-tile kernel: accumulate sum((x - t)^2) into part_ref."""
    n_chunks = tr // chunk

    def kernel(x_ref, t_ref, part_ref):
        c = pl.program_id(0)   # core split ("parallel")
        i = pl.program_id(1)   # row-tile loop ("arbitrary", output resident)

        @pl.when(i == 0)
        def _():
            part_ref[...] = jnp.zeros_like(part_ref)

        # Logical (unclamped) first row of this tile; drives the tail mask.
        row_base = (c * bpc + i) * tr
        # Hoisted once per tile (not per chunk): broadcast is not CSE'd in loops.
        row_iota = jax.lax.broadcasted_iota(jnp.int32, (chunk, LANES), 0)

        def body(j, acc):
            r0 = pl.multiple_of(j * chunk, chunk)
            xb = x_ref[pl.ds(r0, chunk), :].astype(jnp.float32)
            tb = t_ref[pl.ds(r0, chunk), :].astype(jnp.float32)
            d = xb - tb
            rowid = row_base + r0 + row_iota
            # Mask rows past the true extent (ragged tail / phantom blocks);
            # applied before the square so garbage OOB reads never propagate.
            d = jnp.where(rowid < valid_rows, d, 0.0)
            # (chunk,128) -> (chunk//8, 8, 128); axis-0 sum is pure VPU vreg adds.
            return acc + jnp.sum((d * d).reshape(-1, SUBLANES, LANES), axis=0)

        acc = jax.lax.fori_loop(
            0, n_chunks, body,
            jnp.zeros((SUBLANES, LANES), jnp.float32),
            unroll=(n_chunks <= 8))
        part_ref[...] += acc

    return kernel


def content_loss_forward(x, target_detached, weight):
    """Mirrors ContentLoss.forward: returns (output=input, loss)."""
    assert x.shape == target_detached.shape, "input must match target shape"
    total = x.size
    itemsize = jnp.dtype(x.dtype).itemsize

    # ---- Lane-dense 2-D view; zero-copy when total is a multiple of 128. ----
    if total % LANES == 0:
        rows = total // LANES
        x2 = x.reshape(rows, LANES)
        t2 = target_detached.reshape(rows, LANES)
    else:
        # Rare fallback (conv feature maps are normally lane-aligned): pad the
        # flat arrays to the next lane multiple. Zero pads contribute 0 to the
        # squared-diff sum; the mean divides by the true element count.
        rows = -(-total // LANES)
        pad = rows * LANES - total
        x2 = jnp.pad(x.reshape(-1), (0, pad)).reshape(rows, LANES)
        t2 = jnp.pad(target_detached.reshape(-1), (0, pad)).reshape(rows, LANES)

    # ---- Tiling: large tiles, ragged tail handled in-kernel (no row padding).
    tr = min(TR_MAX, -(-rows // SUBLANES) * SUBLANES)    # multiple of 8
    n_blocks = -(-rows // tr)                            # total row-tiles
    nc = min(_num_tensorcores(), n_blocks)               # 2 on v7x, else 1
    bpc = -(-n_blocks // nc)                             # row-tiles per core
    chunk = next(cr for cr in (CHUNK_MAX, 32, 16, 8) if tr % cr == 0)
    last_block = n_blocks - 1

    def row_block_map(c, i):
        # Clamp phantom trailing steps (when nc*bpc > n_blocks) onto the last
        # real block; the kernel's row mask zeroes their contribution.
        return (jnp.minimum(c * bpc + i, last_block), 0)

    # 2 inputs x 2 pipeline buffers per input; leave generous headroom but stay
    # well inside v7x's 64 MiB physical VMEM per TensorCore.
    in_buf_bytes = 2 * 2 * tr * LANES * itemsize
    vmem_limit = min(64 * 1024 * 1024, max(32 * 1024 * 1024, 2 * in_buf_bytes))

    partials = pl.pallas_call(
        _make_kernel(tr, chunk, bpc, rows),
        out_shape=jax.ShapeDtypeStruct((nc, SUBLANES, LANES), jnp.float32),
        grid_spec=pltpu.PrefetchScalarGridSpec(
            num_scalar_prefetch=0,
            grid=(nc, bpc),
            in_specs=[
                pl.BlockSpec((tr, LANES), row_block_map),
                pl.BlockSpec((tr, LANES), row_block_map),
            ],
            out_specs=pl.BlockSpec((None, SUBLANES, LANES),
                                   lambda c, i: (c, 0, 0)),
        ),
        compiler_params=pltpu.CompilerParams(
            dimension_semantics=("parallel", "arbitrary"),
            vmem_limit_bytes=int(vmem_limit)),
        cost_estimate=pl.CostEstimate(
            flops=3 * total,
            transcendentals=0,
            bytes_accessed=2 * total * itemsize),
    )(x2, t2)

    # Tiny epilogue: one cross-lane reduce over (nc, 8, 128) and a single scale.
    # (x*w - t*w)^2 == w^2 * (x - t)^2.
    w = jnp.float32(weight)
    loss = jnp.sum(partials) * (w * w / jnp.float32(total))

    # Module returns the input unchanged; no kernel pass-through copy needed.
    return x, loss


if __name__ == "__main__":
    key = jax.random.PRNGKey(0)
    kx, kt = jax.random.split(key)

    B, C, H, W = 2, 4, 16, 16      # small NCHW feature map
    weight = 0.75                   # deterministic content-loss weight

    x = jax.random.normal(kx, (B, C, H, W), dtype=jnp.float32)
    target = jax.random.normal(kt, (B, C, H, W), dtype=jnp.float32)

    out, loss = content_loss_forward(x, target, weight)
    out, loss = jax.block_until_ready((out, loss))

    # Pure-JAX reference of the PyTorch semantics.
    ref_loss = jnp.mean(((x * weight) - (target * weight)) ** 2)
    assert out.shape == x.shape
    assert jnp.allclose(out, x), "output must be the pass-through input"
    assert jnp.allclose(loss, ref_loss, rtol=1e-5, atol=1e-6), (loss, ref_loss)

    # Ragged case: 1920 elems = 15 lane-rows (not a multiple of 8) -> exercises
    # the in-kernel tail mask with zero wrapper-side padding.
    xr = jax.random.normal(kx, (2, 3, 5, 64), dtype=jnp.float32)
    tgr = jax.random.normal(kt, (2, 3, 5, 64), dtype=jnp.float32)
    _, loss_r = content_loss_forward(xr, tgr, weight)
    loss_r = jax.block_until_ready(loss_r)
    ref_r = jnp.mean(((xr * weight) - (tgr * weight)) ** 2)
    assert jnp.allclose(loss_r, ref_r, rtol=1e-5, atol=1e-6), (loss_r, ref_r)

    print("KERNEL_OK")
</pallas_src>

<mosaic_0001>
module attributes {stable_mosaic.version = 11 : i64} {
  func.func @kernel(%arg0: i32, %arg1: i32, %arg2: memref<16x128xf32, #tpu.memory_space<vmem>>, %arg3: memref<16x128xf32, #tpu.memory_space<vmem>>, %arg4: memref<1x8x128xf32, #tpu.memory_space<vmem>>) attributes {dimension_semantics = [#tpu.dimension_semantics<parallel>, #tpu.dimension_semantics<arbitrary>], iteration_bounds = array<i64: 1, 1>, scalar_prefetch = 0 : i64, scratch_operands = 0 : i64, tpu.core_type = #tpu.core_type<tc>, window_params = [{transform_indices = @transform_0, window_bounds = array<i64: 16, 128>}, {transform_indices = @transform_1, window_bounds = array<i64: 16, 128>}, {transform_indices = @transform_2, window_bounds = array<i64: 1, 8, 128>}]} {
    %c0_i32 = arith.constant 0 : i32
    %0 = arith.cmpi eq, %arg1, %c0_i32 : i32
    %1 = arith.extui %0 : i1 to i32
    %c0_i32_0 = arith.constant 0 : i32
    %2 = arith.cmpi ne, %1, %c0_i32_0 : i32
    scf.if %2 {
      %cst_14 = arith.constant 0.000000e+00 : f32
      %32 = vector.broadcast %cst_14 : f32 to vector<8x128xf32>
      %c0_15 = arith.constant 0 : index
      %c0_16 = arith.constant 0 : index
      %c0_17 = arith.constant 0 : index
      %33 = vector.load %arg4[%c0_15, %c0_16, %c0_17] : memref<1x8x128xf32, #tpu.memory_space<vmem>>, vector<1x8x128xf32>
      %34 = vector.shape_cast %33 : vector<1x8x128xf32> to vector<8x128xf32>
      %35 = vector.shape_cast %32 : vector<8x128xf32> to vector<1x8x128xf32>
      tpu.vector_store %arg4[%c0_15, %c0_16, %c0_17], %35 {strides = array<i32>} : memref<1x8x128xf32, #tpu.memory_space<vmem>>, vector<1x8x128xf32>,
    } else {
    }
    %c1_i32 = arith.constant 1 : i32
    %3 = arith.muli %arg0, %c1_i32 : i32
    %4 = arith.addi %3, %arg1 : i32
    %c16_i32 = arith.constant 16 : i32
    %5 = arith.muli %4, %c16_i32 : i32
    %6 = tpu.iota {dimensions = array<i32: 0>} : vector<16x128xi32>
    %cst = arith.constant 0.000000e+00 : f32
    %7 = vector.broadcast %cst : f32 to vector<8x128xf32>
    %c0_i32_1 = arith.constant 0 : i32
    %c16_i32_2 = arith.constant 16 : i32
    %8 = arith.muli %c0_i32_1, %c16_i32_2 : i32
    %9 = tpu.assume_multiple %8, 16 : i32
    %10 = arith.index_cast %9 : i32 to index
    %c0 = arith.constant 0 : index
    %11 = vector.load %arg2[%10, %c0] : memref<16x128xf32, #tpu.memory_space<vmem>>, vector<16x128xf32>
    %12 = arith.index_cast %9 : i32 to index
    %c0_3 = arith.constant 0 : index
    %13 = vector.load %arg3[%12, %c0_3] : memref<16x128xf32, #tpu.memory_space<vmem>>, vector<16x128xf32>
    %14 = arith.subf %11, %13 : vector<16x128xf32>
    %15 = arith.addi %5, %9 : i32
    %16 = vector.broadcast %15 : i32 to vector<16x128xi32>
    %17 = arith.addi %16, %6 : vector<16x128xi32>
    %c16_i32_4 = arith.constant 16 : i32
    %18 = vector.broadcast %c16_i32_4 : i32 to vector<16x128xi32>
    %19 = arith.cmpi slt, %17, %18 : vector<16x128xi32>
    %cst_5 = arith.constant 0.000000e+00 : f32
    %20 = vector.broadcast %cst_5 : f32 to vector<16x128xf32>
    %21 = arith.select %19, %14, %20 : vector<16x128xi1>, vector<16x128xf32>
    %22 = arith.mulf %21, %21 : vector<16x128xf32>
    %23 = vector.shape_cast %22 : vector<16x128xf32> to vector<2x8x128xf32>
    %cst_6 = arith.constant dense<0.000000e+00> : vector<8x128xf32>
    %24 = vector.multi_reduction <add>, %23, %cst_6 [0] : vector<2x8x128xf32> to vector<8x128xf32>
    %25 = arith.addf %7, %24 : vector<8x128xf32>
    %c1_i32_7 = arith.constant 1 : i32
    %c0_8 = arith.constant 0 : index
    %c0_9 = arith.constant 0 : index
    %c0_10 = arith.constant 0 : index
    %26 = vector.load %arg4[%c0_8, %c0_9, %c0_10] : memref<1x8x128xf32, #tpu.memory_space<vmem>>, vector<1x8x128xf32>
    %27 = vector.shape_cast %26 : vector<1x8x128xf32> to vector<8x128xf32>
    %28 = arith.addf %27, %25 : vector<8x128xf32>
    %c0_11 = arith.constant 0 : index
    %c0_12 = arith.constant 0 : index
    %c0_13 = arith.constant 0 : index
    %29 = vector.load %arg4[%c0_11, %c0_12, %c0_13] : memref<1x8x128xf32, #tpu.memory_space<vmem>>, vector<1x8x128xf32>
    %30 = vector.shape_cast %29 : vector<1x8x128xf32> to vector<8x128xf32>
    %31 = vector.shape_cast %28 : vector<8x128xf32> to vector<1x8x128xf32>
    tpu.vector_store %arg4[%c0_11, %c0_12, %c0_13], %31 {strides = array<i32>} : memref<1x8x128xf32, #tpu.memory_space<vmem>>, vector<1x8x128xf32>,
    return
  }
  func.func @transform_0(%arg0: i32, %arg1: i32) -> (i32, i32) {
    %c1_i32 = arith.constant 1 : i32
    %0 = arith.muli %arg0, %c1_i32 : i32
    %1 = arith.addi %0, %arg1 : i32
    %c0_i32 = arith.constant 0 : i32
    %2 = arith.minsi %1, %c0_i32 : i32
    %c0_i32_0 = arith.constant 0 : i32
    %c0_i32_1 = arith.constant 0 : i32
    return %2, %c0_i32_0 : i32, i32
  }
  func.func @transform_1(%arg0: i32, %arg1: i32) -> (i32, i32) {
    %c1_i32 = arith.constant 1 : i32
    %0 = arith.muli %arg0, %c1_i32 : i32
    %1 = arith.addi %0, %arg1 : i32
    %c0_i32 = arith.constant 0 : i32
    %2 = arith.minsi %1, %c0_i32 : i32
    %c0_i32_0 = arith.constant 0 : i32
    %c0_i32_1 = arith.constant 0 : i32
    return %2, %c0_i32_0 : i32, i32
  }
  func.func @transform_2(%arg0: i32, %arg1: i32) -> (i32, i32, i32) {
    %c0_i32 = arith.constant 0 : i32
    %c0_i32_0 = arith.constant 0 : i32
    %c0_i32_1 = arith.constant 0 : i32
    return %arg0, %c0_i32, %c0_i32_0 : i32, i32, i32
  }
}

</mosaic_0001>

<llo_original>
// kernel: tpu_custom_call.1
$region0: #{tpu_custom_call.1}
  #allocation0 [shape = 'u32[]', space=smem, size = 0x4, offset = 0x4, fixed_abs, tag = 'smem constant byte address 0x4 - core index']
  #allocation1 [shape = 'u32[144,128]{1,0:T(1,128)}', space=vmem, size = 0x12000, scoped, tag = 'internal scratch']
  %s0 = inlined_call_operand.hbm [shape: f32[16,128], index: 0, kind: input, shape index: {}]
  %s1 = inlined_call_operand.hbm [shape: f32[16,128], index: 1, kind: input, shape index: {}]
  %s2 = inlined_call_operand.hbm [shape: f32[1,8,128], index: 2, kind: output, shape index: {}]
  %s3 = sld [smem:[#allocation0]]
  $region30: #{tpu_custom_call.1} parent=0
    _
  %s5 = ssub.s32 1, %s3
  %s6 = scalar_select 0, %s5, %s3
  $region1: #{tpu_custom_call.1} parent=0
    #allocation2 [shape = 'u8[8192]{0}', space=vmem, size = 0x2000, scoped, tag = 'input window, operand 0, single buffered']
    #allocation3 [shape = 's32[1]{0}', space=sflag, size = 0x4, scoped, tag = 'scoped memory for tpu_custom_call.1']
    #allocation4 [shape = 's32[1]{0}', space=sflag, size = 0x4, scoped, tag = 'scoped memory for tpu_custom_call.1']
    #allocation5 [shape = 'u8[8192]{0}', space=vmem, size = 0x2000, scoped, tag = 'input window, operand 1, single buffered']
    #allocation6 [shape = 's32[1]{0}', space=sflag, size = 0x4, scoped, tag = 'scoped memory for tpu_custom_call.1']
    #allocation7 [shape = 'u8[4096]{0}', space=vmem, size = 0x1000, scoped, tag = 'output window, operand 0, single buffered']
    %7 = vsyncpa [#allocation3], 0
    %8 = vsyncpa [#allocation6], 0
    %9 = vsyncpa [#allocation4], 0
    // Predicated region
    $region2: #{tpu_custom_call.1} parent=1 // pred_check
      _
    $region3: #{tpu_custom_call.1} parent=1 // pred_check_branch
      %11 = sbr.rel (0) target = $region5
    $region4: #{tpu_custom_call.1} parent=1 // pred_region
      %s12 = sadd.s32 0, 0
      %p13 = scmp.lt.s32.totalorder %s12, 0
      %s14 = scalar_select %p13, %s12, 0
      %s15 = smul.u32 2, %s14
      %s17 = ssub.s32 256, 256
      %18 = vsyncadd [#allocation3], %s17
      %s19 = smul.addr %s15, 128
      %s20 = scalar_lea.hbm %s0, %s19
      %s21 = sshll.u32 [#allocation2], 4
      %s22 = int_to_ptr.vmem [resolvable:$true] %s21
      %27 = dma.hbm_to_vmem [thread:$0]  %s20, 256, %s22, [#allocation3], 128, 128, 8
    $region5: #{tpu_custom_call.1} parent=1 // pred_fallthru
      _
    // Predicated region
    $region6: #{tpu_custom_call.1} parent=1 // pred_check
      _
    $region7: #{tpu_custom_call.1} parent=1 // pred_check_branch
      %29 = sbr.rel (0) target = $region9
    $region8: #{tpu_custom_call.1} parent=1 // pred_region
      %s30 = sadd.s32 0, 0
      %p31 = scmp.lt.s32.totalorder %s30, 0
      %s32 = scalar_select %p31, %s30, 0
      %s33 = smul.u32 2, %s32
      %s35 = ssub.s32 256, 256
      %36 = vsyncadd [#allocation6], %s35
      %s37 = smul.addr %s33, 128
      %s38 = scalar_lea.hbm %s1, %s37
      %s39 = sshll.u32 [#allocation5], 4
      %s40 = int_to_ptr.vmem [resolvable:$true] %s39
      %45 = dma.hbm_to_vmem [thread:$0]  %s38, 256, %s40, [#allocation6], 128, 128, 8
    $region9: #{tpu_custom_call.1} parent=1 // pred_fallthru
      _
    // Predicated region
    $region10: #{tpu_custom_call.1} parent=1 // pred_check
      _
    $region11: #{tpu_custom_call.1} parent=1 // pred_check_branch
      %47 = sbr.rel (0) target = $region13
    $region12: #{tpu_custom_call.1} parent=1 // pred_region
      %48 = dma.done [#allocation3], 256
    $region13: #{tpu_custom_call.1} parent=1 // pred_fallthru
      _
    // Predicated region
    $region14: #{tpu_custom_call.1} parent=1 // pred_check
      _
    $region15: #{tpu_custom_call.1} parent=1 // pred_check_branch
      %50 = sbr.rel (0) target = $region17
    $region16: #{tpu_custom_call.1} parent=1 // pred_region
      %51 = dma.done [#allocation6], 256
    $region17: #{tpu_custom_call.1} parent=1 // pred_fallthru
      _
    %s52 = sadd.s32 0, 0
    %p53 = scmp.lt.s32.totalorder %s52, 0
    %s54 = scalar_select %p53, %s52, 0
    %s55 = smul.u32 2, %s54
    %s56 = sadd.s32 0, 0
    %p57 = scmp.lt.s32.totalorder %s56, 0
    %s58 = scalar_select %p57, %s56, 0
    %s59 = smul.u32 2, %s58
    %p60 = scmp.eq.s32.totalorder 0, 0
    // Predicated region
    $region18: #{tpu_custom_call.1} parent=1 // pred_check
      %p61 = pneg %p60
    $region19: #{tpu_custom_call.1} parent=1 // pred_check_branch
      %63 = sbr.rel (%p61) target = $region21
    $region20: #{tpu_custom_call.1} parent=1 // pred_region
      %64 = vst [vmem:[#allocation7] sm:$0xff] 0.0
    $region21: #{tpu_custom_call.1} parent=1 // pred_fallthru
      _
    %s65 = sadd.s32 0, 0
    %s66 = smul.u32 %s65, 16
    %v67 = vlaneseq
    %v68 = vshrl.u32 %v67, 7
    %v69 = vadd.s32 %v68, 8
    %v70 = vld [vmem:[#allocation2] sm:$0xff]
    %v71 = vld [vmem:[#allocation2 + $0x8] sm:$0xff]
    %v72 = vld [vmem:[#allocation5] sm:$0xff]
    %v73 = vld [vmem:[#allocation5 + $0x8] sm:$0xff]
    %v74 = vsub.f32 %v70, %v72
    %v75 = vsub.f32 %v71, %v73
    %s76 = sadd.s32 %s66, 0
    %v77 = vstv %s76
    %v78 = vadd.s32 %v77, %v68
    %v79 = vadd.s32 %v77, %v69
    %vm80 = vcmp.lt.s32.totalorder %v78, 16
    %vm81 = vcmp.lt.s32.totalorder %v79, 16
    %v82 = vsel %vm80, %v74, 0.0
    %v83 = vsel %vm81, %v75, 0.0
    %v84 = vmul.f32 %v82, %v82
    %v85 = vmul.f32 %v83, %v83
    %v86 = vadd.f32 %v84, %v85
    %v87 = vadd.f32 %v86, 0.0
    %v88 = vld [vmem:[#allocation7] sm:$0xff]
    %v89 = vadd.f32 %v88, %v87
    %90 = vst [vmem:[#allocation7] sm:$0xff] %v89
    // Predicated region
    $region22: #{tpu_custom_call.1} parent=1 // pred_check
      _
    $region23: #{tpu_custom_call.1} parent=1 // pred_check_branch
      %92 = sbr.rel (0) target = $region25
    $region24: #{tpu_custom_call.1} parent=1 // pred_region
      %s94 = ssub.s32 128, 128
      %95 = vsyncadd [#allocation4], %s94
      %s97 = sshll.u32 [#allocation7], 4
      %s98 = int_to_ptr.vmem [resolvable:$true] %s97
      %100 = dma.vmem_to_hbm [thread:$0]  %s98, 128, %s2, [#allocation4]
    $region25: #{tpu_custom_call.1} parent=1 // pred_fallthru
      _
    // Predicated region
    $region26: #{tpu_custom_call.1} parent=1 // pred_check
      _
    $region27: #{tpu_custom_call.1} parent=1 // pred_check_branch
      %102 = sbr.rel (0) target = $region29
    $region28: #{tpu_custom_call.1} parent=1 // pred_region
      %103 = dma.done [#allocation4], 128
    $region29: #{tpu_custom_call.1} parent=1 // pred_fallthru
      _
    %104 = vsyncpa [#allocation3], 1
    %105 = vsyncpa [#allocation6], 1
    %106 = vsyncpa [#allocation4], 1

</llo_original>
